<compile_context>
chip_gen: v5e
topology: v5e:2x2
jax: 0.10.0
libtpu: 0.0.40
codegen_flags: <defaults>
</compile_context>

<pallas_src>
import jax
import jax.numpy as jnp
from jax import lax
from jax.experimental import pallas as pl
from jax.experimental.pallas import tpu as pltpu

AUXK_COEF = 1.0 / 32.0      # module default auxk_coef = 1/32
CL_COEF = 1.0               # module default cl_coef = 1
_NORM_EPS = 1e-12           # F.normalize default eps
_NEG = -1e30                # "masked logit" value for padded rows / cols


# --------------------------------------------------------------------------
# sizing helpers
# --------------------------------------------------------------------------
def _round_up(x, m):
    return ((x + m - 1) // m) * m


def _divisors_desc(n):
    ds = set()
    d = 1
    while d * d <= n:
        if n % d == 0:
            ds.add(d)
            ds.add(n // d)
        d += 1
    return sorted(ds, reverse=True)


def _vmem_budget():
    """Usable VMEM budget (bytes) for one pallas_call on this generation."""
    cap = 64 << 20          # conservative fallback (v7x per-core physical)
    try:
        info = pltpu.get_tpu_info()
        cap = int(getattr(info, "vmem_capacity_bytes", 0)) or cap
    except Exception:
        pass
    return max(32 << 20, min(int(cap * 0.75), 100 << 20))


def _pick_stats_tile(b_pad, d, budget):
    """Largest batch tile (mult of 8, divides b_pad, <=512) fitting VMEM."""
    per_row = d * (2 * 8 * 4 + 2 * 2 * 2)      # 8 f32 in + 2 bf16 out, 2-buf
    fixed = 4 * (2 * d + 64) + (1 << 20)
    for t in _divisors_desc(b_pad):
        if t % 8 or t > 512:
            continue
        if t * per_row + fixed <= budget:
            return t
    return 8


def _pick_tq(b_pad, tk, d, budget, cap=1024):
    """Largest query tile (multiple of tk dividing b_pad, <= cap) that fits."""
    n_k = b_pad // tk
    col_scr = 2 * n_k * 8 * tk * 4
    for f in _divisors_desc(n_k):
        tq = f * tk
        if tq > cap:
            continue
        est = (4 * tq * d + 4 * tk * d          # double-buffered bf16 streams
               + 4 * tq * tk * 4                # s tile + exp temps (generous)
               + 2 * tq * 128 * 4               # m_row / l_row (lane padded)
               + col_scr + (1 << 20))
        if est <= budget:
            return tq
    return tk


# --------------------------------------------------------------------------
# Kernel A: one streaming pass -> MSE/auxk sums, diag, normalized bf16 arrays
# --------------------------------------------------------------------------
def _make_stats_kernel(B, D, TA, padded):
    b_f = float(B)
    d_f = float(D)
    inv_nel = 1.0 / (b_f * d_f)

    def kernel(ls_ref,                                    # SMEM (1,)
               img_ref, txt_ref, img_rec_ref, txt_rec_ref,
               img4k_ref, txt4k_ref, imgaux_ref, txtaux_ref,   # (TA, D) f32
               prebias_ref,                               # (1, D)
               stats_ref,                                 # SMEM out (8,)
               qn_ref, kn_ref,                            # (TA, D) bf16 out
               sq_rec, sq_4k, num_ai, num_at, ssq_ti, ssq_tt,
               cs_ti, cs_tt, diag_s):
        i = pl.program_id(0)
        n = pl.num_programs(0)
        ls = ls_ref[0]

        @pl.when(i == 0)
        def _():
            for r in (sq_rec, sq_4k, num_ai, num_at, ssq_ti, ssq_tt,
                      cs_ti, cs_tt, diag_s):
                r[...] = jnp.zeros_like(r)

        def l2n(x):
            nrm = jnp.sqrt(jnp.sum(x * x, axis=-1, keepdims=True))
            return x / jnp.maximum(nrm, _NORM_EPS)

        img = img_ref[...]
        txt = txt_ref[...]
        img_rec = img_rec_ref[...]
        txt_rec = txt_rec_ref[...]
        prebias = prebias_ref[...]

        # plain MSE terms (padded rows are all-zero -> contribute 0)
        d_ir = img - img_rec
        d_tr = txt - txt_rec
        sq_rec[...] += jnp.sum(d_ir * d_ir) + jnp.sum(d_tr * d_tr)

        d_i4 = img - img4k_ref[...]
        d_t4 = txt - txt4k_ref[...]
        sq_4k[...] += jnp.sum(d_i4 * d_i4) + jnp.sum(d_t4 * d_t4)

        # auxk targets (detach() does not change the forward value)
        tgt_i = d_ir + prebias
        tgt_t = d_tr + prebias
        if padded:
            rows = i * TA + lax.broadcasted_iota(jnp.int32, (TA, 1), 0)
            maskf = (rows < B).astype(jnp.float32)
            tgt_i = tgt_i * maskf
            tgt_t = tgt_t * maskf
        da_i = imgaux_ref[...] - tgt_i
        da_t = txtaux_ref[...] - tgt_t
        num_ai[...] += jnp.sum(da_i * da_i)
        num_at[...] += jnp.sum(da_t * da_t)
        ssq_ti[...] += jnp.sum(tgt_i * tgt_i)
        ssq_tt[...] += jnp.sum(tgt_t * tgt_t)
        cs_ti[...] += jnp.sum(tgt_i, axis=0, keepdims=True)
        cs_tt[...] += jnp.sum(tgt_t, axis=0, keepdims=True)

        # CLIP operands: normalize once, fold logit_scale into the query side,
        # store as bf16 for the MXU pass (padded rows -> zero vectors).
        img_n = l2n(img_rec)
        txt_n = l2n(txt_rec)
        diag_s[...] += ls * jnp.sum(img_n * txt_n)
        qn_ref[...] = (ls * img_n).astype(jnp.bfloat16)
        kn_ref[...] = txt_n.astype(jnp.bfloat16)

        @pl.when(i == n - 1)
        def _():
            mu_i = cs_ti[...] * (1.0 / b_f)
            mu_t = cs_tt[...] * (1.0 / b_f)
            # den == mse(broadcast(mu), tgt); clamp at 0 against cancellation.
            den_i = jnp.sum(ssq_ti[...]) * inv_nel - jnp.sum(mu_i * mu_i) / d_f
            den_t = jnp.sum(ssq_tt[...]) * inv_nel - jnp.sum(mu_t * mu_t) / d_f
            stats_ref[0] = jnp.sum(sq_rec[...]) * inv_nel
            stats_ref[1] = jnp.sum(sq_4k[...]) * inv_nel
            stats_ref[2] = jnp.sum(num_ai[...]) * inv_nel
            stats_ref[3] = jnp.sum(num_at[...]) * inv_nel
            stats_ref[4] = jnp.maximum(den_i, 0.0)
            stats_ref[5] = jnp.maximum(den_t, 0.0)
            stats_ref[6] = jnp.sum(diag_s[...])
            stats_ref[7] = 0.0

    return kernel


# --------------------------------------------------------------------------
# Kernel B: flash-style contrastive pass (bf16 MXU, online row/col LSE)
# --------------------------------------------------------------------------
def _make_cl_kernel(B, TQ, TK, padded):

    def kernel(qn_ref, kn_ref,                 # (TQ, D) bf16, (TK, D) bf16
               out_ref,                        # SMEM out (4,)
               m_row, l_row, m_col, l_col, ce_img_s):
        qi = pl.program_id(0)
        ki = pl.program_id(1)
        n_q = pl.num_programs(0)
        n_k = pl.num_programs(1)

        @pl.when(jnp.logical_and(qi == 0, ki == 0))
        def _():
            ce_img_s[...] = jnp.zeros_like(ce_img_s)

        @pl.when(ki == 0)
        def _():
            m_row[...] = jnp.full_like(m_row, -jnp.inf)
            l_row[...] = jnp.zeros_like(l_row)

        @pl.when(qi == 0)
        def _():
            m_col[ki] = jnp.full((1, TK), -jnp.inf, jnp.float32)
            l_col[ki] = jnp.zeros((1, TK), jnp.float32)

        # bf16 x bf16 -> f32 on the MXU; logit_scale already folded into qn.
        s = lax.dot_general(
            qn_ref[...], kn_ref[...],
            dimension_numbers=(((1,), (1,)), ((), ())),
            preferred_element_type=jnp.float32)            # (TQ, TK)

        if padded:
            rows = qi * TQ + lax.broadcasted_iota(jnp.int32, (TQ, 1), 0)
            cols = ki * TK + lax.broadcasted_iota(jnp.int32, (1, TK), 1)
            valid = jnp.logical_and(rows < B, cols < B)
            s = jnp.where(valid, s, _NEG)

        # row-direction (image -> text) online log-sum-exp
        row_max = jnp.max(s, axis=1, keepdims=True)
        m_new = jnp.maximum(m_row[...], row_max)
        l_row[...] = (l_row[...] * jnp.exp(m_row[...] - m_new)
                      + jnp.sum(jnp.exp(s - m_new), axis=1, keepdims=True))
        m_row[...] = m_new

        # column-direction (text -> image) online log-sum-exp
        # TODO(synk): a single shared exp for both directions needs a rescale
        # by exp(m_row - m_col) which can overflow f32 for large logit_scale;
        # keeping two exp passes for robustness.
        col_max = jnp.max(s, axis=0, keepdims=True)
        mc_old = m_col[ki]
        mc_new = jnp.maximum(mc_old, col_max)
        l_col[ki] = (l_col[ki] * jnp.exp(mc_old - mc_new)
                     + jnp.sum(jnp.exp(s - mc_new), axis=0, keepdims=True))
        m_col[ki] = mc_new

        # close the row LSE for this query tile
        @pl.when(ki == n_k - 1)
        def _():
            contrib = m_row[...] + jnp.log(l_row[...])
            if padded:
                contrib = jnp.where(m_row[...] > -1e29, contrib, 0.0)
            ce_img_s[...] += jnp.sum(contrib)

        # finalize: emit the two LSE sums
        @pl.when(jnp.logical_and(qi == n_q - 1, ki == n_k - 1))
        def _():
            mc = m_col[...]
            cc = mc + jnp.log(l_col[...])
            if padded:
                cc = jnp.where(mc > -1e29, cc, 0.0)
            out_ref[0] = jnp.sum(ce_img_s[...])
            out_ref[1] = jnp.sum(cc)
            out_ref[2] = 0.0
            out_ref[3] = 0.0

    return kernel


# --------------------------------------------------------------------------
# wrapper
# --------------------------------------------------------------------------
def csr_loss(image_features, text_features, img_recon, text_recon,
             img_recon_4k, text_recon_4k, img_auxk, text_auxk,
             logit_scale, prebias,
             auxk_coef=AUXK_COEF, cl_coef=CL_COEF,
             tile_q=None, tile_k=None):
    """All feature args are (B, D); prebias is (D,); logit_scale is scalar."""
    f32 = jnp.float32
    feats = [image_features, text_features, img_recon, text_recon,
             img_recon_4k, text_recon_4k, img_auxk, text_auxk]
    feats = [jnp.asarray(x, f32) for x in feats]
    B, D = feats[0].shape

    budget = _vmem_budget()

    # ------------------------- tiling / padding ----------------------------
    if tile_k is None:
        TK = min(256, _round_up(B, 8))
    else:
        TK = int(tile_k)
        assert TK % 8 == 0, TK
    B_pad = _round_up(B, TK)
    n_k = B_pad // TK
    if tile_q is None:
        TQ = _pick_tq(B_pad, TK, D, budget)
    else:
        TQ = int(tile_q)
        assert TQ % 8 == 0 and B_pad % TQ == 0, (B_pad, TQ)
    n_q = B_pad // TQ
    padded = (B_pad != B)
    if padded:
        feats = [jnp.pad(x, ((0, B_pad - B), (0, 0))) for x in feats]

    TA = _pick_stats_tile(B_pad, D, budget)
    n_a = B_pad // TA

    prebias_2d = jnp.asarray(prebias, f32).reshape(1, D)
    ls = jnp.asarray(logit_scale, f32).reshape(1)

    vmem_limit = int(max(32 << 20, budget))
    smem_spec = pl.BlockSpec(memory_space=pltpu.MemorySpace.SMEM)

    # ------------------- pass A: stats + normalized bf16 -------------------
    row_spec_a = pl.BlockSpec((TA, D), lambda i: (i, 0))
    pb_spec = pl.BlockSpec((1, D), lambda i: (0, 0))
    scratch_a = ([pltpu.VMEM((1, 1), f32) for _ in range(6)]
                 + [pltpu.VMEM((1, D), f32) for _ in range(2)]
                 + [pltpu.VMEM((1, 1), f32)])

    stats, qn, kn = pl.pallas_call(
        _make_stats_kernel(B, D, TA, padded),
        out_shape=(jax.ShapeDtypeStruct((8,), f32),
                   jax.ShapeDtypeStruct((B_pad, D), jnp.bfloat16),
                   jax.ShapeDtypeStruct((B_pad, D), jnp.bfloat16)),
        grid_spec=pltpu.PrefetchScalarGridSpec(
            num_scalar_prefetch=0,
            grid=(n_a,),
            in_specs=[smem_spec] + [row_spec_a] * 8 + [pb_spec],
            out_specs=(smem_spec, row_spec_a, row_spec_a),
            scratch_shapes=scratch_a),
        compiler_params=pltpu.CompilerParams(
            dimension_semantics=("arbitrary",),
            vmem_limit_bytes=vmem_limit),
        cost_estimate=pl.CostEstimate(
            flops=int(40 * B_pad * D),
            transcendentals=int(4 * B_pad),
            bytes_accessed=int(B_pad * D * (8 * 4 + 2 * 2) + 8 * D)),
    )(ls, *feats, prebias_2d)

    # ---------------- pass B: flash-style contrastive LSEs -----------------
    q_spec = pl.BlockSpec((TQ, D), lambda qi, ki: (qi, 0))
    k_spec = pl.BlockSpec((TK, D), lambda qi, ki: (ki, 0))
    scratch_b = [pltpu.VMEM((TQ, 1), f32), pltpu.VMEM((TQ, 1), f32),
                 pltpu.VMEM((n_k, 1, TK), f32), pltpu.VMEM((n_k, 1, TK), f32),
                 pltpu.VMEM((1, 1), f32)]

    # TODO(synk): on v7x, shard the qi axis across the two TensorCores with
    # per-core m_col/l_col/ce partials reduced in the wrapper (~2x on v7x).
    cl_sums = pl.pallas_call(
        _make_cl_kernel(B, TQ, TK, padded),
        out_shape=jax.ShapeDtypeStruct((4,), f32),
        grid_spec=pltpu.PrefetchScalarGridSpec(
            num_scalar_prefetch=0,
            grid=(n_q, n_k),
            in_specs=[q_spec, k_spec],
            out_specs=smem_spec,
            scratch_shapes=scratch_b),
        compiler_params=pltpu.CompilerParams(
            dimension_semantics=("arbitrary", "arbitrary"),
            vmem_limit_bytes=vmem_limit),
        cost_estimate=pl.CostEstimate(
            flops=int(2 * B_pad * B_pad * D),
            transcendentals=int(2 * B_pad * B_pad),
            bytes_accessed=int(2 * (n_q * B_pad * D + B_pad * D))),
    )(qn, kn)

    # ------------------------- scalar combination --------------------------
    b_f = jnp.asarray(float(B), f32)
    recon = stats[0]
    recon4k = stats[1]
    aux_i = jnp.nan_to_num(stats[2] / stats[4])     # NaN->0, +/-inf->fmax/fmin
    aux_t = jnp.nan_to_num(stats[3] / stats[5])
    loss_auxk = 0.5 * (aux_i + aux_t)
    diag = stats[6]
    ce_img = (cl_sums[0] - diag) / b_f
    ce_txt = (cl_sums[1] - diag) / b_f
    loss_cl = 0.5 * (ce_img + ce_txt)
    total = recon + 0.125 * recon4k + auxk_coef * loss_auxk + cl_coef * loss_cl
    return {"loss": total, "loss_k": recon, "loss_4k": recon4k,
            "loss_auxk": loss_auxk, "loss_cl": loss_cl}


# --------------------------------------------------------------------------
# pure-JAX reference + tests
# --------------------------------------------------------------------------
def _reference(image_features, text_features, img_recon, text_recon,
               img_recon_4k, text_recon_4k, img_auxk, text_auxk,
               logit_scale, prebias):
    def mse(a, b):
        return jnp.mean((a - b) ** 2)

    def nmse(recon, xs):
        mu = xs.mean(axis=0, keepdims=True)
        return jnp.nan_to_num(mse(recon, xs) / mse(jnp.broadcast_to(mu, xs.shape), xs))

    recon_l = mse(image_features, img_recon) + mse(text_features, text_recon)
    recon_4k = mse(image_features, img_recon_4k) + mse(text_features, text_recon_4k)
    auxk = 0.5 * (nmse(img_auxk, image_features - img_recon + prebias)
                  + nmse(text_auxk, text_features - text_recon + prebias))
    imn = img_recon / jnp.maximum(
        jnp.linalg.norm(img_recon, axis=-1, keepdims=True), _NORM_EPS)
    txn = text_recon / jnp.maximum(
        jnp.linalg.norm(text_recon, axis=-1, keepdims=True), _NORM_EPS)
    lg = logit_scale * imn @ txn.T
    b = image_features.shape[0]
    lbl = jnp.arange(b)
    ce_i = jnp.mean(jax.nn.logsumexp(lg, axis=1) - lg[lbl, lbl])
    ce_t = jnp.mean(jax.nn.logsumexp(lg.T, axis=1) - lg[lbl, lbl])
    cl = 0.5 * (ce_i + ce_t)
    total = recon_l + 0.125 * recon_4k + AUXK_COEF * auxk + CL_COEF * cl
    return {"loss": total, "loss_k": recon_l, "loss_4k": recon_4k,
            "loss_auxk": auxk, "loss_cl": cl}


def _make_inputs(B, D, seed=0):
    key = jax.random.PRNGKey(seed)
    keys = jax.random.split(key, 9)
    args = [jax.random.normal(keys[i], (B, D), jnp.float32) for i in range(8)]
    prebias = jax.random.normal(keys[8], (D,), jnp.float32) * 0.01
    logit_scale = jnp.float32(10.0)   # deterministic stand-in for exp(temp)
    return (*args, logit_scale, prebias)


def _check(B, D, **kw):
    inputs = _make_inputs(B, D)
    got = jax.block_until_ready(csr_loss(*inputs, **kw))
    want = _reference(*inputs)
    for k in ("loss", "loss_k", "loss_4k", "loss_auxk", "loss_cl"):
        # bf16 contrastive logits -> loss-level tolerance is relaxed vs f32.
        assert jnp.allclose(got[k], want[k], rtol=2e-2, atol=2e-2), (
            k, got[k], want[k])


if __name__ == "__main__":
    # single-tile case: grid (1, 1), no padding
    _check(8, 32)
    # multi-tile flash path with decoupled TQ/TK: grid (2, 4)
    _check(64, 128, tile_q=32, tile_k=16)
    # padded path: B=44 -> B_pad=48, grid (3, 3), rows 44..47 masked
    _check(44, 48, tile_q=16, tile_k=16)
    print("KERNEL_OK")
</pallas_src>

<mosaic_0001>
module attributes {stable_mosaic.version = 11 : i64} {
  func.func @kernel(%arg0: i32, %arg1: memref<1xf32, #tpu.memory_space<smem>>, %arg2: memref<8x32xf32, #tpu.memory_space<vmem>>, %arg3: memref<8x32xf32, #tpu.memory_space<vmem>>, %arg4: memref<8x32xf32, #tpu.memory_space<vmem>>, %arg5: memref<8x32xf32, #tpu.memory_space<vmem>>, %arg6: memref<8x32xf32, #tpu.memory_space<vmem>>, %arg7: memref<8x32xf32, #tpu.memory_space<vmem>>, %arg8: memref<8x32xf32, #tpu.memory_space<vmem>>, %arg9: memref<8x32xf32, #tpu.memory_space<vmem>>, %arg10: memref<1x32xf32, #tpu.memory_space<vmem>>, %arg11: memref<8xf32, #tpu.memory_space<smem>>, %arg12: memref<8x32xbf16, #tpu.memory_space<vmem>>, %arg13: memref<8x32xbf16, #tpu.memory_space<vmem>>, %arg14: memref<1x1xf32, #tpu.memory_space<vmem>>, %arg15: memref<1x1xf32, #tpu.memory_space<vmem>>, %arg16: memref<1x1xf32, #tpu.memory_space<vmem>>, %arg17: memref<1x1xf32, #tpu.memory_space<vmem>>, %arg18: memref<1x1xf32, #tpu.memory_space<vmem>>, %arg19: memref<1x1xf32, #tpu.memory_space<vmem>>, %arg20: memref<1x32xf32, #tpu.memory_space<vmem>>, %arg21: memref<1x32xf32, #tpu.memory_space<vmem>>, %arg22: memref<1x1xf32, #tpu.memory_space<vmem>>) attributes {dimension_semantics = [#tpu.dimension_semantics<arbitrary>], iteration_bounds = array<i64: 1>, scalar_prefetch = 0 : i64, scratch_operands = 9 : i64, tpu.core_type = #tpu.core_type<tc>, window_params = [{transform_indices = @transform_0, window_bounds = array<i64: 1>}, {transform_indices = @transform_1, window_bounds = array<i64: 8, 32>}, {transform_indices = @transform_2, window_bounds = array<i64: 8, 32>}, {transform_indices = @transform_3, window_bounds = array<i64: 8, 32>}, {transform_indices = @transform_4, window_bounds = array<i64: 8, 32>}, {transform_indices = @transform_5, window_bounds = array<i64: 8, 32>}, {transform_indices = @transform_6, window_bounds = array<i64: 8, 32>}, {transform_indices = @transform_7, window_bounds = array<i64: 8, 32>}, {transform_indices = @transform_8, window_bounds = array<i64: 8, 32>}, {pipeline_mode = #tpu.pipeline_mode<synchronous>, transform_indices = @transform_9, window_bounds = array<i64: 1, 32>}, {transform_indices = @transform_10, window_bounds = array<i64: 8>}, {transform_indices = @transform_11, window_bounds = array<i64: 8, 32>}, {transform_indices = @transform_12, window_bounds = array<i64: 8, 32>}]} {
    %c0 = arith.constant 0 : index
    %0 = memref.load %arg1[%c0] : memref<1xf32, #tpu.memory_space<smem>>
    %c0_i32 = arith.constant 0 : i32
    %1 = arith.cmpi eq, %arg0, %c0_i32 : i32
    %2 = arith.extui %1 : i1 to i32
    %c0_i32_0 = arith.constant 0 : i32
    %3 = arith.cmpi ne, %2, %c0_i32_0 : i32
    scf.if %3 {
      %cst_75 = arith.constant 0.000000e+00 : f32
      %134 = vector.broadcast %cst_75 : f32 to vector<1x1xf32>
      %c0_76 = arith.constant 0 : index
      %c0_77 = arith.constant 0 : index
      %135 = vector.load %arg14[%c0_76, %c0_77] : memref<1x1xf32, #tpu.memory_space<vmem>>, vector<1x1xf32>
      tpu.vector_store %arg14[%c0_76, %c0_77], %134 {strides = array<i32>} : memref<1x1xf32, #tpu.memory_space<vmem>>, vector<1x1xf32>,
      %cst_78 = arith.constant 0.000000e+00 : f32
      %136 = vector.broadcast %cst_78 : f32 to vector<1x1xf32>
      %c0_79 = arith.constant 0 : index
      %c0_80 = arith.constant 0 : index
      %137 = vector.load %arg15[%c0_79, %c0_80] : memref<1x1xf32, #tpu.memory_space<vmem>>, vector<1x1xf32>
      tpu.vector_store %arg15[%c0_79, %c0_80], %136 {strides = array<i32>} : memref<1x1xf32, #tpu.memory_space<vmem>>, vector<1x1xf32>,
      %cst_81 = arith.constant 0.000000e+00 : f32
      %138 = vector.broadcast %cst_81 : f32 to vector<1x1xf32>
      %c0_82 = arith.constant 0 : index
      %c0_83 = arith.constant 0 : index
      %139 = vector.load %arg16[%c0_82, %c0_83] : memref<1x1xf32, #tpu.memory_space<vmem>>, vector<1x1xf32>
      tpu.vector_store %arg16[%c0_82, %c0_83], %138 {strides = array<i32>} : memref<1x1xf32, #tpu.memory_space<vmem>>, vector<1x1xf32>,
      %cst_84 = arith.constant 0.000000e+00 : f32
      %140 = vector.broadcast %cst_84 : f32 to vector<1x1xf32>
      %c0_85 = arith.constant 0 : index
      %c0_86 = arith.constant 0 : index
      %141 = vector.load %arg17[%c0_85, %c0_86] : memref<1x1xf32, #tpu.memory_space<vmem>>, vector<1x1xf32>
      tpu.vector_store %arg17[%c0_85, %c0_86], %140 {strides = array<i32>} : memref<1x1xf32, #tpu.memory_space<vmem>>, vector<1x1xf32>,
      %cst_87 = arith.constant 0.000000e+00 : f32
      %142 = vector.broadcast %cst_87 : f32 to vector<1x1xf32>
      %c0_88 = arith.constant 0 : index
      %c0_89 = arith.constant 0 : index
      %143 = vector.load %arg18[%c0_88, %c0_89] : memref<1x1xf32, #tpu.memory_space<vmem>>, vector<1x1xf32>
      tpu.vector_store %arg18[%c0_88, %c0_89], %142 {strides = array<i32>} : memref<1x1xf32, #tpu.memory_space<vmem>>, vector<1x1xf32>,
      %cst_90 = arith.constant 0.000000e+00 : f32
      %144 = vector.broadcast %cst_90 : f32 to vector<1x1xf32>
      %c0_91 = arith.constant 0 : index
      %c0_92 = arith.constant 0 : index
      %145 = vector.load %arg19[%c0_91, %c0_92] : memref<1x1xf32, #tpu.memory_space<vmem>>, vector<1x1xf32>
      tpu.vector_store %arg19[%c0_91, %c0_92], %144 {strides = array<i32>} : memref<1x1xf32, #tpu.memory_space<vmem>>, vector<1x1xf32>,
      %cst_93 = arith.constant 0.000000e+00 : f32
      %146 = vector.broadcast %cst_93 : f32 to vector<1x32xf32>
      %c0_94 = arith.constant 0 : index
      %c0_95 = arith.constant 0 : index
      %147 = vector.load %arg20[%c0_94, %c0_95] : memref<1x32xf32, #tpu.memory_space<vmem>>, vector<1x32xf32>
      tpu.vector_store %arg20[%c0_94, %c0_95], %146 {strides = array<i32>} : memref<1x32xf32, #tpu.memory_space<vmem>>, vector<1x32xf32>,
      %cst_96 = arith.constant 0.000000e+00 : f32
      %148 = vector.broadcast %cst_96 : f32 to vector<1x32xf32>
      %c0_97 = arith.constant 0 : index
      %c0_98 = arith.constant 0 : index
      %149 = vector.load %arg21[%c0_97, %c0_98] : memref<1x32xf32, #tpu.memory_space<vmem>>, vector<1x32xf32>
      tpu.vector_store %arg21[%c0_97, %c0_98], %148 {strides = array<i32>} : memref<1x32xf32, #tpu.memory_space<vmem>>, vector<1x32xf32>,
      %cst_99 = arith.constant 0.000000e+00 : f32
      %150 = vector.broadcast %cst_99 : f32 to vector<1x1xf32>
      %c0_100 = arith.constant 0 : index
      %c0_101 = arith.constant 0 : index
      %151 = vector.load %arg22[%c0_100, %c0_101] : memref<1x1xf32, #tpu.memory_space<vmem>>, vector<1x1xf32>
      tpu.vector_store %arg22[%c0_100, %c0_101], %150 {strides = array<i32>} : memref<1x1xf32, #tpu.memory_space<vmem>>, vector<1x1xf32>,
    } else {
    }
    %c0_1 = arith.constant 0 : index
    %c0_2 = arith.constant 0 : index
    %4 = vector.load %arg2[%c0_1, %c0_2] : memref<8x32xf32, #tpu.memory_space<vmem>>, vector<8x32xf32>
    %c0_3 = arith.constant 0 : index
    %c0_4 = arith.constant 0 : index
    %5 = vector.load %arg3[%c0_3, %c0_4] : memref<8x32xf32, #tpu.memory_space<vmem>>, vector<8x32xf32>
    %c0_5 = arith.constant 0 : index
    %c0_6 = arith.constant 0 : index
    %6 = vector.load %arg4[%c0_5, %c0_6] : memref<8x32xf32, #tpu.memory_space<vmem>>, vector<8x32xf32>
    %c0_7 = arith.constant 0 : index
    %c0_8 = arith.constant 0 : index
    %7 = vector.load %arg5[%c0_7, %c0_8] : memref<8x32xf32, #tpu.memory_space<vmem>>, vector<8x32xf32>
    %c0_9 = arith.constant 0 : index
    %c0_10 = arith.constant 0 : index
    %8 = vector.load %arg10[%c0_9, %c0_10] : memref<1x32xf32, #tpu.memory_space<vmem>>, vector<1x32xf32>
    %9 = arith.subf %4, %6 : vector<8x32xf32>
    %10 = arith.subf %5, %7 : vector<8x32xf32>
    %c0_11 = arith.constant 0 : index
    %c0_12 = arith.constant 0 : index
    %11 = vector.load %arg14[%c0_11, %c0_12] : memref<1x1xf32, #tpu.memory_space<vmem>>, vector<1x1xf32>
    %12 = arith.mulf %9, %9 : vector<8x32xf32>
    %13 = vector.shape_cast %12 : vector<8x32xf32> to vector<1x8x32xf32>
    %cst = arith.constant dense<0.000000e+00> : vector<1xf32>
    %14 = vector.multi_reduction <add>, %13, %cst [1, 2] : vector<1x8x32xf32> to vector<1xf32>
    %15 = vector.shape_cast %14 : vector<1xf32> to vector<1x1x1xf32>
    %16 = vector.extract %15[0, 0, 0] : f32 from vector<1x1x1xf32>
    %17 = arith.mulf %10, %10 : vector<8x32xf32>
    %18 = vector.shape_cast %17 : vector<8x32xf32> to vector<1x8x32xf32>
    %cst_13 = arith.constant dense<0.000000e+00> : vector<1xf32>
    %19 = vector.multi_reduction <add>, %18, %cst_13 [1, 2] : vector<1x8x32xf32> to vector<1xf32>
    %20 = vector.shape_cast %19 : vector<1xf32> to vector<1x1x1xf32>
    %21 = vector.extract %20[0, 0, 0] : f32 from vector<1x1x1xf32>
    %22 = arith.addf %16, %21 : f32
    %23 = vector.broadcast %22 : f32 to vector<1x1xf32>
    %24 = arith.addf %11, %23 : vector<1x1xf32>
    %c0_14 = arith.constant 0 : index
    %c0_15 = arith.constant 0 : index
    %25 = vector.load %arg14[%c0_14, %c0_15] : memref<1x1xf32, #tpu.memory_space<vmem>>, vector<1x1xf32>
    tpu.vector_store %arg14[%c0_14, %c0_15], %24 {strides = array<i32>} : memref<1x1xf32, #tpu.memory_space<vmem>>, vector<1x1xf32>,
    %c0_16 = arith.constant 0 : index
    %c0_17 = arith.constant 0 : index
    %26 = vector.load %arg6[%c0_16, %c0_17] : memref<8x32xf32, #tpu.memory_space<vmem>>, vector<8x32xf32>
    %27 = arith.subf %4, %26 : vector<8x32xf32>
    %c0_18 = arith.constant 0 : index
    %c0_19 = arith.constant 0 : index
    %28 = vector.load %arg7[%c0_18, %c0_19] : memref<8x32xf32, #tpu.memory_space<vmem>>, vector<8x32xf32>
    %29 = arith.subf %5, %28 : vector<8x32xf32>
    %c0_20 = arith.constant 0 : index
    %c0_21 = arith.constant 0 : index
    %30 = vector.load %arg15[%c0_20, %c0_21] : memref<1x1xf32, #tpu.memory_space<vmem>>, vector<1x1xf32>
    %31 = arith.mulf %27, %27 : vector<8x32xf32>
    %32 = vector.shape_cast %31 : vector<8x32xf32> to vector<1x8x32xf32>
    %cst_22 = arith.constant dense<0.000000e+00> : vector<1xf32>
    %33 = vector.multi_reduction <add>, %32, %cst_22 [1, 2] : vector<1x8x32xf32> to vector<1xf32>
    %34 = vector.shape_cast %33 : vector<1xf32> to vector<1x1x1xf32>
    %35 = vector.extract %34[0, 0, 0] : f32 from vector<1x1x1xf32>
    %36 = arith.mulf %29, %29 : vector<8x32xf32>
    %37 = vector.shape_cast %36 : vector<8x32xf32> to vector<1x8x32xf32>
    %cst_23 = arith.constant dense<0.000000e+00> : vector<1xf32>
    %38 = vector.multi_reduction <add>, %37, %cst_23 [1, 2] : vector<1x8x32xf32> to vector<1xf32>
    %39 = vector.shape_cast %38 : vector<1xf32> to vector<1x1x1xf32>
    %40 = vector.extract %39[0, 0, 0] : f32 from vector<1x1x1xf32>
    %41 = arith.addf %35, %40 : f32
    %42 = vector.broadcast %41 : f32 to vector<1x1xf32>
    %43 = arith.addf %30, %42 : vector<1x1xf32>
    %c0_24 = arith.constant 0 : index
    %c0_25 = arith.constant 0 : index
    %44 = vector.load %arg15[%c0_24, %c0_25] : memref<1x1xf32, #tpu.memory_space<vmem>>, vector<1x1xf32>
    tpu.vector_store %arg15[%c0_24, %c0_25], %43 {strides = array<i32>} : memref<1x1xf32, #tpu.memory_space<vmem>>, vector<1x1xf32>,
    %45 = vector.broadcast %8 : vector<1x32xf32> to vector<8x32xf32>
    %46 = arith.addf %9, %45 : vector<8x32xf32>
    %47 = vector.broadcast %8 : vector<1x32xf32> to vector<8x32xf32>
    %48 = arith.addf %10, %47 : vector<8x32xf32>
    %c0_26 = arith.constant 0 : index
    %c0_27 = arith.constant 0 : index
    %49 = vector.load %arg8[%c0_26, %c0_27] : memref<8x32xf32, #tpu.memory_space<vmem>>, vector<8x32xf32>
    %50 = arith.subf %49, %46 : vector<8x32xf32>
    %c0_28 = arith.constant 0 : index
    %c0_29 = arith.constant 0 : index
    %51 = vector.load %arg9[%c0_28, %c0_29] : memref<8x32xf32, #tpu.memory_space<vmem>>, vector<8x32xf32>
    %52 = arith.subf %51, %48 : vector<8x32xf32>
    %c0_30 = arith.constant 0 : index
    %c0_31 = arith.constant 0 : index
    %53 = vector.load %arg16[%c0_30, %c0_31] : memref<1x1xf32, #tpu.memory_space<vmem>>, vector<1x1xf32>
    %54 = arith.mulf %50, %50 : vector<8x32xf32>
    %55 = vector.shape_cast %54 : vector<8x32xf32> to vector<1x8x32xf32>
    %cst_32 = arith.constant dense<0.000000e+00> : vector<1xf32>
    %56 = vector.multi_reduction <add>, %55, %cst_32 [1, 2] : vector<1x8x32xf32> to vector<1xf32>
    %57 = vector.shape_cast %56 : vector<1xf32> to vector<1x1x1xf32>
    %58 = vector.extract %57[0, 0, 0] : f32 from vector<1x1x1xf32>
    %59 = vector.broadcast %58 : f32 to vector<1x1xf32>
    %60 = arith.addf %53, %59 : vector<1x1xf32>
    %c0_33 = arith.constant 0 : index
    %c0_34 = arith.constant 0 : index
    %61 = vector.load %arg16[%c0_33, %c0_34] : memref<1x1xf32, #tpu.memory_space<vmem>>, vector<1x1xf32>
    tpu.vector_store %arg16[%c0_33, %c0_34], %60 {strides = array<i32>} : memref<1x1xf32, #tpu.memory_space<vmem>>, vector<1x1xf32>,
    %c0_35 = arith.constant 0 : index
    %c0_36 = arith.constant 0 : index
    %62 = vector.load %arg17[%c0_35, %c0_36] : memref<1x1xf32, #tpu.memory_space<vmem>>, vector<1x1xf32>
    %63 = arith.mulf %52, %52 : vector<8x32xf32>
    %64 = vector.shape_cast %63 : vector<8x32xf32> to vector<1x8x32xf32>
    %cst_37 = arith.constant dense<0.000000e+00> : vector<1xf32>
    %65 = vector.multi_reduction <add>, %64, %cst_37 [1, 2] : vector<1x8x32xf32> to vector<1xf32>
    %66 = vector.shape_cast %65 : vector<1xf32> to vector<1x1x1xf32>
    %67 = vector.extract %66[0, 0, 0] : f32 from vector<1x1x1xf32>
    %68 = vector.broadcast %67 : f32 to vector<1x1xf32>
    %69 = arith.addf %62, %68 : vector<1x1xf32>
    %c0_38 = arith.constant 0 : index
    %c0_39 = arith.constant 0 : index
    %70 = vector.load %arg17[%c0_38, %c0_39] : memref<1x1xf32, #tpu.memory_space<vmem>>, vector<1x1xf32>
    tpu.vector_store %arg17[%c0_38, %c0_39], %69 {strides = array<i32>} : memref<1x1xf32, #tpu.memory_space<vmem>>, vector<1x1xf32>,
    %c0_40 = arith.constant 0 : index
    %c0_41 = arith.constant 0 : index
    %71 = vector.load %arg18[%c0_40, %c0_41] : memref<1x1xf32, #tpu.memory_space<vmem>>, vector<1x1xf32>
    %72 = arith.mulf %46, %46 : vector<8x32xf32>
    %73 = vector.shape_cast %72 : vector<8x32xf32> to vector<1x8x32xf32>
    %cst_42 = arith.constant dense<0.000000e+00> : vector<1xf32>
    %74 = vector.multi_reduction <add>, %73, %cst_42 [1, 2] : vector<1x8x32xf32> to vector<1xf32>
    %75 = vector.shape_cast %74 : vector<1xf32> to vector<1x1x1xf32>
    %76 = vector.extract %75[0, 0, 0] : f32 from vector<1x1x1xf32>
    %77 = vector.broadcast %76 : f32 to vector<1x1xf32>
    %78 = arith.addf %71, %77 : vector<1x1xf32>
    %c0_43 = arith.constant 0 : index
    %c0_44 = arith.constant 0 : index
    %79 = vector.load %arg18[%c0_43, %c0_44] : memref<1x1xf32, #tpu.memory_space<vmem>>, vector<1x1xf32>
    tpu.vector_store %arg18[%c0_43, %c0_44], %78 {strides = array<i32>} : memref<1x1xf32, #tpu.memory_space<vmem>>, vector<1x1xf32>,
    %c0_45 = arith.constant 0 : index
    %c0_46 = arith.constant 0 : index
    %80 = vector.load %arg19[%c0_45, %c0_46] : memref<1x1xf32, #tpu.memory_space<vmem>>, vector<1x1xf32>
    %81 = arith.mulf %48, %48 : vector<8x32xf32>
    %82 = vector.shape_cast %81 : vector<8x32xf32> to vector<1x8x32xf32>
    %cst_47 = arith.constant dense<0.000000e+00> : vector<1xf32>
    %83 = vector.multi_reduction <add>, %82, %cst_47 [1, 2] : vector<1x8x32xf32> to vector<1xf32>
    %84 = vector.shape_cast %83 : vector<1xf32> to vector<1x1x1xf32>
    %85 = vector.extract %84[0, 0, 0] : f32 from vector<1x1x1xf32>
    %86 = vector.broadcast %85 : f32 to vector<1x1xf32>
    %87 = arith.addf %80, %86 : vector<1x1xf32>
    %c0_48 = arith.constant 0 : index
    %c0_49 = arith.constant 0 : index
    %88 = vector.load %arg19[%c0_48, %c0_49] : memref<1x1xf32, #tpu.memory_space<vmem>>, vector<1x1xf32>
    tpu.vector_store %arg19[%c0_48, %c0_49], %87 {strides = array<i32>} : memref<1x1xf32, #tpu.memory_space<vmem>>, vector<1x1xf32>,
    %c0_50 = arith.constant 0 : index
    %c0_51 = arith.constant 0 : index
    %89 = vector.load %arg20[%c0_50, %c0_51] : memref<1x32xf32, #tpu.memory_space<vmem>>, vector<1x32xf32>
    %cst_52 = arith.constant dense<0.000000e+00> : vector<32xf32>
    %90 = vector.multi_reduction <add>, %46, %cst_52 [0] : vector<8x32xf32> to vector<32xf32>
    %91 = vector.shape_cast %90 : vector<32xf32> to vector<1x32xf32>
    %92 = arith.addf %89, %91 : vector<1x32xf32>
    %c0_53 = arith.constant 0 : index
    %c0_54 = arith.constant 0 : index
    %93 = vector.load %arg20[%c0_53, %c0_54] : memref<1x32xf32, #tpu.memory_space<vmem>>, vector<1x32xf32>
    tpu.vector_store %arg20[%c0_53, %c0_54], %92 {strides = array<i32>} : memref<1x32xf32, #tpu.memory_space<vmem>>, vector<1x32xf32>,
    %c0_55 = arith.constant 0 : index
    %c0_56 = arith.constant 0 : index
    %94 = vector.load %arg21[%c0_55, %c0_56] : memref<1x32xf32, #tpu.memory_space<vmem>>, vector<1x32xf32>
    %cst_57 = arith.constant dense<0.000000e+00> : vector<32xf32>
    %95 = vector.multi_reduction <add>, %48, %cst_57 [0] : vector<8x32xf32> to vector<32xf32>
    %96 = vector.shape_cast %95 : vector<32xf32> to vector<1x32xf32>
    %97 = arith.addf %94, %96 : vector<1x32xf32>
    %c0_58 = arith.constant 0 : index
    %c0_59 = arith.constant 0 : index
    %98 = vector.load %arg21[%c0_58, %c0_59] : memref<1x32xf32, #tpu.memory_space<vmem>>, vector<1x32xf32>
    tpu.vector_store %arg21[%c0_58, %c0_59], %97 {strides = array<i32>} : memref<1x32xf32, #tpu.memory_space<vmem>>, vector<1x32xf32>,
    %99 = arith.mulf %6, %6 : vector<8x32xf32>
    %cst_60 = arith.constant dense<0.000000e+00> : vector<8xf32>
    %100 = vector.multi_reduction <add>, %99, %cst_60 [1] : vector<8x32xf32> to vector<8xf32>
    %101 = vector.shape_cast %100 : vector<8xf32> to vector<8x1xf32>
    %102 = math.sqrt %101 : vector<8x1xf32>
    %cst_61 = arith.constant 9.99999996E-13 : f32
    %103 = vector.broadcast %cst_61 : f32 to vector<8x1xf32>
    %104 = arith.maximumf %102, %103 : vector<8x1xf32>
    %105 = vector.broadcast %104 : vector<8x1xf32> to vector<8x32xf32>
    %106 = arith.divf %6, %105 : vector<8x32xf32>
    %107 = arith.mulf %7, %7 : vector<8x32xf32>
    %cst_62 = arith.constant dense<0.000000e+00> : vector<8xf32>
    %108 = vector.multi_reduction <add>, %107, %cst_62 [1] : vector<8x32xf32> to vector<8xf32>
    %109 = vector.shape_cast %108 : vector<8xf32> to vector<8x1xf32>
    %110 = math.sqrt %109 : vector<8x1xf32>
    %cst_63 = arith.constant 9.99999996E-13 : f32
    %111 = vector.broadcast %cst_63 : f32 to vector<8x1xf32>
    %112 = arith.maximumf %110, %111 : vector<8x1xf32>
    %113 = vector.broadcast %112 : vector<8x1xf32> to vector<8x32xf32>
    %114 = arith.divf %7, %113 : vector<8x32xf32>
    %c0_64 = arith.constant 0 : index
    %c0_65 = arith.constant 0 : index
    %115 = vector.load %arg22[%c0_64, %c0_65] : memref<1x1xf32, #tpu.memory_space<vmem>>, vector<1x1xf32>
    %116 = arith.mulf %106, %114 : vector<8x32xf32>
    %117 = vector.shape_cast %116 : vector<8x32xf32> to vector<1x8x32xf32>
    %cst_66 = arith.constant dense<0.000000e+00> : vector<1xf32>
    %118 = vector.multi_reduction <add>, %117, %cst_66 [1, 2] : vector<1x8x32xf32> to vector<1xf32>
    %119 = vector.shape_cast %118 : vector<1xf32> to vector<1x1x1xf32>
    %120 = vector.extract %119[0, 0, 0] : f32 from vector<1x1x1xf32>
    %121 = arith.mulf %0, %120 : f32
    %122 = vector.broadcast %121 : f32 to vector<1x1xf32>
    %123 = arith.addf %115, %122 : vector<1x1xf32>
    %c0_67 = arith.constant 0 : index
    %c0_68 = arith.constant 0 : index
    %124 = vector.load %arg22[%c0_67, %c0_68] : memref<1x1xf32, #tpu.memory_space<vmem>>, vector<1x1xf32>
    tpu.vector_store %arg22[%c0_67, %c0_68], %123 {strides = array<i32>} : memref<1x1xf32, #tpu.memory_space<vmem>>, vector<1x1xf32>,
    %125 = vector.broadcast %0 : f32 to vector<8x32xf32>
    %126 = arith.mulf %125, %106 : vector<8x32xf32>
    %127 = arith.truncf %126 : vector<8x32xf32> to vector<8x32xbf16>
    %c0_69 = arith.constant 0 : index
    %c0_70 = arith.constant 0 : index
    %128 = vector.load %arg12[%c0_69, %c0_70] : memref<8x32xbf16, #tpu.memory_space<vmem>>, vector<8x32xbf16>
    tpu.vector_store %arg12[%c0_69, %c0_70], %127 {strides = array<i32>} : memref<8x32xbf16, #tpu.memory_space<vmem>>, vector<8x32xbf16>,
    %129 = arith.truncf %114 : vector<8x32xf32> to vector<8x32xbf16>
    %c0_71 = arith.constant 0 : index
    %c0_72 = arith.constant 0 : index
    %130 = vector.load %arg13[%c0_71, %c0_72] : memref<8x32xbf16, #tpu.memory_space<vmem>>, vector<8x32xbf16>
    tpu.vector_store %arg13[%c0_71, %c0_72], %129 {strides = array<i32>} : memref<8x32xbf16, #tpu.memory_space<vmem>>, vector<8x32xbf16>,
    %c0_i32_73 = arith.constant 0 : i32
    %131 = arith.cmpi eq, %arg0, %c0_i32_73 : i32
    %132 = arith.extui %131 : i1 to i32
    %c0_i32_74 = arith.constant 0 : i32
    %133 = arith.cmpi ne, %132, %c0_i32_74 : i32
    scf.if %133 {
      %c0_75 = arith.constant 0 : index
      %c0_76 = arith.constant 0 : index
      %134 = vector.load %arg20[%c0_75, %c0_76] : memref<1x32xf32, #tpu.memory_space<vmem>>, vector<1x32xf32>
      %cst_77 = arith.constant 1.250000e-01 : f32
      %135 = vector.broadcast %cst_77 : f32 to vector<1x32xf32>
      %136 = arith.mulf %134, %135 : vector<1x32xf32>
      %c0_78 = arith.constant 0 : index
      %c0_79 = arith.constant 0 : index
      %137 = vector.load %arg21[%c0_78, %c0_79] : memref<1x32xf32, #tpu.memory_space<vmem>>, vector<1x32xf32>
      %cst_80 = arith.constant 1.250000e-01 : f32
      %138 = vector.broadcast %cst_80 : f32 to vector<1x32xf32>
      %139 = arith.mulf %137, %138 : vector<1x32xf32>
      %c0_81 = arith.constant 0 : index
      %c0_82 = arith.constant 0 : index
      %140 = vector.load %arg18[%c0_81, %c0_82] : memref<1x1xf32, #tpu.memory_space<vmem>>, vector<1x1xf32>
      %141 = vector.shape_cast %140 : vector<1x1xf32> to vector<1x1x1xf32>
      %cst_83 = arith.constant dense<0.000000e+00> : vector<1xf32>
      %142 = vector.multi_reduction <add>, %141, %cst_83 [1, 2] : vector<1x1x1xf32> to vector<1xf32>
      %143 = vector.shape_cast %142 : vector<1xf32> to vector<1x1x1xf32>
      %144 = vector.extract %143[0, 0, 0] : f32 from vector<1x1x1xf32>
      %cst_84 = arith.constant 3.906250e-03 : f32
      %145 = arith.mulf %144, %cst_84 : f32
      %146 = arith.mulf %136, %136 : vector<1x32xf32>
      %147 = vector.shape_cast %146 : vector<1x32xf32> to vector<1x1x32xf32>
      %cst_85 = arith.constant dense<0.000000e+00> : vector<1xf32>
      %148 = vector.multi_reduction <add>, %147, %cst_85 [1, 2] : vector<1x1x32xf32> to vector<1xf32>
      %149 = vector.shape_cast %148 : vector<1xf32> to vector<1x1x1xf32>
      %150 = vector.extract %149[0, 0, 0] : f32 from vector<1x1x1xf32>
      %cst_86 = arith.constant 3.200000e+01 : f32
      %151 = arith.divf %150, %cst_86 : f32
      %152 = arith.subf %145, %151 : f32
      %c0_87 = arith.constant 0 : index
      %c0_88 = arith.constant 0 : index
      %153 = vector.load %arg19[%c0_87, %c0_88] : memref<1x1xf32, #tpu.memory_space<vmem>>, vector<1x1xf32>
      %154 = vector.shape_cast %153 : vector<1x1xf32> to vector<1x1x1xf32>
      %cst_89 = arith.constant dense<0.000000e+00> : vector<1xf32>
      %155 = vector.multi_reduction <add>, %154, %cst_89 [1, 2] : vector<1x1x1xf32> to vector<1xf32>
      %156 = vector.shape_cast %155 : vector<1xf32> to vector<1x1x1xf32>
      %157 = vector.extract %156[0, 0, 0] : f32 from vector<1x1x1xf32>
      %cst_90 = arith.constant 3.906250e-03 : f32
      %158 = arith.mulf %157, %cst_90 : f32
      %159 = arith.mulf %139, %139 : vector<1x32xf32>
      %160 = vector.shape_cast %159 : vector<1x32xf32> to vector<1x1x32xf32>
      %cst_91 = arith.constant dense<0.000000e+00> : vector<1xf32>
      %161 = vector.multi_reduction <add>, %160, %cst_91 [1, 2] : vector<1x1x32xf32> to vector<1xf32>
      %162 = vector.shape_cast %161 : vector<1xf32> to vector<1x1x1xf32>
      %163 = vector.extract %162[0, 0, 0] : f32 from vector<1x1x1xf32>
      %cst_92 = arith.constant 3.200000e+01 : f32
      %164 = arith.divf %163, %cst_92 : f32
      %165 = arith.subf %158, %164 : f32
      %c0_93 = arith.constant 0 : index
      %c0_94 = arith.constant 0 : index
      %166 = vector.load %arg14[%c0_93, %c0_94] : memref<1x1xf32, #tpu.memory_space<vmem>>, vector<1x1xf32>
      %167 = vector.shape_cast %166 : vector<1x1xf32> to vector<1x1x1xf32>
      %cst_95 = arith.constant dense<0.000000e+00> : vector<1xf32>
      %168 = vector.multi_reduction <add>, %167, %cst_95 [1, 2] : vector<1x1x1xf32> to vector<1xf32>
      %169 = vector.shape_cast %168 : vector<1xf32> to vector<1x1x1xf32>
      %170 = vector.extract %169[0, 0, 0] : f32 from vector<1x1x1xf32>
      %cst_96 = arith.constant 3.906250e-03 : f32
      %171 = arith.mulf %170, %cst_96 : f32
      %c0_97 = arith.constant 0 : index
      %172 = memref.load %arg11[%c0_97] : memref<8xf32, #tpu.memory_space<smem>>
      memref.store %171, %arg11[%c0_97] : memref<8xf32, #tpu.memory_space<smem>>
      %c0_98 = arith.constant 0 : index
      %c0_99 = arith.constant 0 : index
      %173 = vector.load %arg15[%c0_98, %c0_99] : memref<1x1xf32, #tpu.memory_space<vmem>>, vector<1x1xf32>
      %174 = vector.shape_cast %173 : vector<1x1xf32> to vector<1x1x1xf32>
      %cst_100 = arith.constant dense<0.000000e+00> : vector<1xf32>
      %175 = vector.multi_reduction <add>, %174, %cst_100 [1, 2] : vector<1x1x1xf32> to vector<1xf32>
      %176 = vector.shape_cast %175 : vector<1xf32> to vector<1x1x1xf32>
      %177 = vector.extract %176[0, 0, 0] : f32 from vector<1x1x1xf32>
      %cst_101 = arith.constant 3.906250e-03 : f32
      %178 = arith.mulf %177, %cst_101 : f32
      %c1 = arith.constant 1 : index
      %179 = memref.load %arg11[%c1] : memref<8xf32, #tpu.memory_space<smem>>
      memref.store %178, %arg11[%c1] : memref<8xf32, #tpu.memory_space<smem>>
      %c0_102 = arith.constant 0 : index
      %c0_103 = arith.constant 0 : index
      %180 = vector.load %arg16[%c0_102, %c0_103] : memref<1x1xf32, #tpu.memory_space<vmem>>, vector<1x1xf32>
      %181 = vector.shape_cast %180 : vector<1x1xf32> to vector<1x1x1xf32>
      %cst_104 = arith.constant dense<0.000000e+00> : vector<1xf32>
      %182 = vector.multi_reduction <add>, %181, %cst_104 [1, 2] : vector<1x1x1xf32> to vector<1xf32>
      %183 = vector.shape_cast %182 : vector<1xf32> to vector<1x1x1xf32>
      %184 = vector.extract %183[0, 0, 0] : f32 from vector<1x1x1xf32>
      %cst_105 = arith.constant 3.906250e-03 : f32
      %185 = arith.mulf %184, %cst_105 : f32
      %c2 = arith.constant 2 : index
      %186 = memref.load %arg11[%c2] : memref<8xf32, #tpu.memory_space<smem>>
      memref.store %185, %arg11[%c2] : memref<8xf32, #tpu.memory_space<smem>>
      %c0_106 = arith.constant 0 : index
      %c0_107 = arith.constant 0 : index
      %187 = vector.load %arg17[%c0_106, %c0_107] : memref<1x1xf32, #tpu.memory_space<vmem>>, vector<1x1xf32>
      %188 = vector.shape_cast %187 : vector<1x1xf32> to vector<1x1x1xf32>
      %cst_108 = arith.constant dense<0.000000e+00> : vector<1xf32>
      %189 = vector.multi_reduction <add>, %188, %cst_108 [1, 2] : vector<1x1x1xf32> to vector<1xf32>
      %190 = vector.shape_cast %189 : vector<1xf32> to vector<1x1x1xf32>
      %191 = vector.extract %190[0, 0, 0] : f32 from vector<1x1x1xf32>
      %cst_109 = arith.constant 3.906250e-03 : f32
      %192 = arith.mulf %191, %cst_109 : f32
      %c3 = arith.constant 3 : index
      %193 = memref.load %arg11[%c3] : memref<8xf32, #tpu.memory_space<smem>>
      memref.store %192, %arg11[%c3] : memref<8xf32, #tpu.memory_space<smem>>
      %cst_110 = arith.constant 0.000000e+00 : f32
      %194 = arith.maximumf %152, %cst_110 : f32
      %c4 = arith.constant 4 : index
      %195 = memref.load %arg11[%c4] : memref<8xf32, #tpu.memory_space<smem>>
      memref.store %194, %arg11[%c4] : memref<8xf32, #tpu.memory_space<smem>>
      %cst_111 = arith.constant 0.000000e+00 : f32
      %196 = arith.maximumf %165, %cst_111 : f32
      %c5 = arith.constant 5 : index
      %197 = memref.load %arg11[%c5] : memref<8xf32, #tpu.memory_space<smem>>
      memref.store %196, %arg11[%c5] : memref<8xf32, #tpu.memory_space<smem>>
      %c0_112 = arith.constant 0 : index
      %c0_113 = arith.constant 0 : index
      %198 = vector.load %arg22[%c0_112, %c0_113] : memref<1x1xf32, #tpu.memory_space<vmem>>, vector<1x1xf32>
      %199 = vector.shape_cast %198 : vector<1x1xf32> to vector<1x1x1xf32>
      %cst_114 = arith.constant dense<0.000000e+00> : vector<1xf32>
      %200 = vector.multi_reduction <add>, %199, %cst_114 [1, 2] : vector<1x1x1xf32> to vector<1xf32>
      %201 = vector.shape_cast %200 : vector<1xf32> to vector<1x1x1xf32>
      %202 = vector.extract %201[0, 0, 0] : f32 from vector<1x1x1xf32>
      %c6 = arith.constant 6 : index
      %203 = memref.load %arg11[%c6] : memref<8xf32, #tpu.memory_space<smem>>
      memref.store %202, %arg11[%c6] : memref<8xf32, #tpu.memory_space<smem>>
      %cst_115 = arith.constant 0.000000e+00 : f32
      %c7 = arith.constant 7 : index
      %204 = memref.load %arg11[%c7] : memref<8xf32, #tpu.memory_space<smem>>
      memref.store %cst_115, %arg11[%c7] : memref<8xf32, #tpu.memory_space<smem>>
    } else {
    }
    return
  }
  func.func @transform_0(%arg0: i32) -> i32 {
    %c0_i32 = arith.constant 0 : i32
    %c0_i32_0 = arith.constant 0 : i32
    return %c0_i32 : i32
  }
  func.func @transform_1(%arg0: i32) -> (i32, i32) {
    %c0_i32 = arith.constant 0 : i32
    %c0_i32_0 = arith.constant 0 : i32
    return %arg0, %c0_i32 : i32, i32
  }
  func.func @transform_2(%arg0: i32) -> (i32, i32) {
    %c0_i32 = arith.constant 0 : i32
    %c0_i32_0 = arith.constant 0 : i32
    return %arg0, %c0_i32 : i32, i32
  }
  func.func @transform_3(%arg0: i32) -> (i32, i32) {
    %c0_i32 = arith.constant 0 : i32
    %c0_i32_0 = arith.constant 0 : i32
    return %arg0, %c0_i32 : i32, i32
  }
  func.func @transform_4(%arg0: i32) -> (i32, i32) {
    %c0_i32 = arith.constant 0 : i32
    %c0_i32_0 = arith.constant 0 : i32
    return %arg0, %c0_i32 : i32, i32
  }
  func.func @transform_5(%arg0: i32) -> (i32, i32) {
    %c0_i32 = arith.constant 0 : i32
    %c0_i32_0 = arith.constant 0 : i32
    return %arg0, %c0_i32 : i32, i32
  }
  func.func @transform_6(%arg0: i32) -> (i32, i32) {
    %c0_i32 = arith.constant 0 : i32
    %c0_i32_0 = arith.constant 0 : i32
    return %arg0, %c0_i32 : i32, i32
  }
  func.func @transform_7(%arg0: i32) -> (i32, i32) {
    %c0_i32 = arith.constant 0 : i32
    %c0_i32_0 = arith.constant 0 : i32
    return %arg0, %c0_i32 : i32, i32
  }
  func.func @transform_8(%arg0: i32) -> (i32, i32) {
    %c0_i32 = arith.constant 0 : i32
    %c0_i32_0 = arith.constant 0 : i32
    return %arg0, %c0_i32 : i32, i32
  }
  func.func @transform_9(%arg0: i32) -> (i32, i32) {
    %c0_i32 = arith.constant 0 : i32
    %c0_i32_0 = arith.constant 0 : i32
    %c0_i32_1 = arith.constant 0 : i32
    return %c0_i32, %c0_i32_0 : i32, i32
  }
  func.func @transform_10(%arg0: i32) -> i32 {
    %c0_i32 = arith.constant 0 : i32
    %c0_i32_0 = arith.constant 0 : i32
    return %c0_i32 : i32
  }
  func.func @transform_11(%arg0: i32) -> (i32, i32) {
    %c0_i32 = arith.constant 0 : i32
    %c0_i32_0 = arith.constant 0 : i32
    return %arg0, %c0_i32 : i32, i32
  }
  func.func @transform_12(%arg0: i32) -> (i32, i32) {
    %c0_i32 = arith.constant 0 : i32
    %c0_i32_0 = arith.constant 0 : i32
    return %arg0, %c0_i32 : i32, i32
  }
}

</mosaic_0001>

<llo_original>
// kernel: tpu_custom_call.1
$region0: #{tpu_custom_call.1}
  #allocation0 [shape = 'u32[]', space=smem, size = 0x4, offset = 0x4, fixed_abs, tag = 'smem constant byte address 0x4 - core index']
  #allocation1 [shape = 'u32[72,128]{1,0:T(1,128)}', space=vmem, size = 0x9000, scoped, tag = 'internal scratch']
  #allocation2 [shape = 'f32[1,1]{1,0:T(1,128)}', space=vmem, size = 0x200, scoped, tag = 'scratch operand']
  #allocation3 [shape = 'f32[1,1]{1,0:T(1,128)}', space=vmem, size = 0x200, scoped, tag = 'scratch operand']
  #allocation4 [shape = 'f32[1,1]{1,0:T(1,128)}', space=vmem, size = 0x200, scoped, tag = 'scratch operand']
  #allocation5 [shape = 'f32[1,1]{1,0:T(1,128)}', space=vmem, size = 0x200, scoped, tag = 'scratch operand']
  #allocation6 [shape = 'f32[1,1]{1,0:T(1,128)}', space=vmem, size = 0x200, scoped, tag = 'scratch operand']
  #allocation7 [shape = 'f32[1,1]{1,0:T(1,128)}', space=vmem, size = 0x200, scoped, tag = 'scratch operand']
  #allocation8 [shape = 'f32[1,32]{1,0:T(1,128)}', space=vmem, size = 0x200, scoped, tag = 'scratch operand']
  #allocation9 [shape = 'f32[1,32]{1,0:T(1,128)}', space=vmem, size = 0x200, scoped, tag = 'scratch operand']
  #allocation10 [shape = 'f32[1,1]{1,0:T(1,128)}', space=vmem, size = 0x200, scoped, tag = 'scratch operand']
  #allocation11 [shape = 'f32[1]{0:T(128)S(6)}', space=smem, size = 0x200, scoped, tag = 'scoped memory for tpu_custom_call.1']
  %s0 = inlined_call_operand.<no memory space> [shape: f32[1], index: 0, kind: input, shape index: {}]
  %s1 = inlined_call_operand.hbm [shape: f32[8,32], index: 1, kind: input, shape index: {}]
  %s2 = inlined_call_operand.hbm [shape: f32[8,32], index: 2, kind: input, shape index: {}]
  %s3 = inlined_call_operand.hbm [shape: f32[8,32], index: 3, kind: input, shape index: {}]
  %s4 = inlined_call_operand.hbm [shape: f32[8,32], index: 4, kind: input, shape index: {}]
  %s5 = inlined_call_operand.hbm [shape: f32[8,32], index: 5, kind: input, shape index: {}]
  %s6 = inlined_call_operand.hbm [shape: f32[8,32], index: 6, kind: input, shape index: {}]
  %s7 = inlined_call_operand.hbm [shape: f32[8,32], index: 7, kind: input, shape index: {}]
  %s8 = inlined_call_operand.vmem [shape: f32[8,32], index: 8, kind: input, shape index: {}]
  %s9 = inlined_call_operand.vmem [shape: f32[1,32], index: 9, kind: input, shape index: {}]
  %s10 = inlined_call_operand.hbm [shape: f32[8], index: 10, kind: output, shape index: {0}]
  %s11 = inlined_call_operand.hbm [shape: bf16[8,32], index: 11, kind: output, shape index: {1}]
  %s12 = inlined_call_operand.hbm [shape: bf16[8,32], index: 12, kind: output, shape index: {2}]
  %13 = xla_tuple %s10, %s11, %s12
  %s14 = sld [smem:[#allocation0]]
  $region102: #{tpu_custom_call.1} parent=0
    _
  %s16 = ssub.s32 1, %s14
  %s17 = scalar_select 0, %s16, %s14
  %18 = sst [smem:[#allocation11]] %s0
  $region1: #{tpu_custom_call.1} parent=0
    #allocation12 [shape = 'u8[4096]{0}', space=vmem, size = 0x1000, scoped, tag = 'input window, operand 1, single buffered']
    #allocation13 [shape = 's32[1]{0}', space=sflag, size = 0x4, scoped, tag = 'scoped memory for tpu_custom_call.1']
    #allocation14 [shape = 's32[1]{0}', space=sflag, size = 0x4, scoped, tag = 'scoped memory for tpu_custom_call.1']
    #allocation15 [shape = 's32[1]{0}', space=sflag, size = 0x4, scoped, tag = 'scoped memory for tpu_custom_call.1']
    #allocation16 [shape = 'u8[4096]{0}', space=vmem, size = 0x1000, scoped, tag = 'input window, operand 2, single buffered']
    #allocation17 [shape = 's32[1]{0}', space=sflag, size = 0x4, scoped, tag = 'scoped memory for tpu_custom_call.1']
    #allocation18 [shape = 'u8[4096]{0}', space=vmem, size = 0x1000, scoped, tag = 'input window, operand 3, single buffered']
    #allocation19 [shape = 'u8[4096]{0}', space=vmem, size = 0x1000, scoped, tag = 'input window, operand 4, single buffered']
    #allocation20 [shape = 's32[1]{0}', space=sflag, size = 0x4, scoped, tag = 'scoped memory for tpu_custom_call.1']
    #allocation21 [shape = 'u8[4096]{0}', space=vmem, size = 0x1000, scoped, tag = 'input window, operand 5, single buffered']
    #allocation22 [shape = 'u8[4096]{0}', space=vmem, size = 0x1000, scoped, tag = 'input window, operand 6, single buffered']
    #allocation23 [shape = 's32[1]{0}', space=sflag, size = 0x4, scoped, tag = 'scoped memory for tpu_custom_call.1']
    #allocation24 [shape = 'u8[4096]{0}', space=vmem, size = 0x1000, scoped, tag = 'input window, operand 7, single buffered']
    #allocation25 [shape = 'u8[512]{0}', space=smem, size = 0x200, scoped, tag = 'output window, operand 0, single buffered']
    #allocation26 [shape = 'u8[2048]{0}', space=vmem, size = 0x800, scoped, tag = 'output window, operand 1, single buffered']
    #allocation27 [shape = 'u8[2048]{0}', space=vmem, size = 0x800, scoped, tag = 'output window, operand 2, single buffered']
    #allocation28 [shape = 's32[1]{0}', space=sflag, size = 0x4, scoped, tag = 'scoped memory for tpu_custom_call.1']
    %19 = vsyncpa [#allocation13], 0
    %20 = vsyncpa [#allocation17], 0
    %21 = vsyncpa [#allocation20], 0
    %22 = vsyncpa [#allocation23], 0
    %23 = vsyncpa [#allocation15], 0
    %24 = vsyncpa [#allocation14], 0
    %25 = vsyncpa [#allocation28], 0
    // Predicated region
    $region2: #{tpu_custom_call.1} parent=1 // pred_check
      _
    $region3: #{tpu_custom_call.1} parent=1 // pred_check_branch
      %27 = sbr.rel (0) target = $region5
    $region4: #{tpu_custom_call.1} parent=1 // pred_region
      _
    $region5: #{tpu_custom_call.1} parent=1 // pred_fallthru
      _
    // Predicated region
    $region6: #{tpu_custom_call.1} parent=1 // pred_check
      _
    $region7: #{tpu_custom_call.1} parent=1 // pred_check_branch
      %29 = sbr.rel (0) target = $region9
    $region8: #{tpu_custom_call.1} parent=1 // pred_region
      %31 = vsyncadd [#allocation13], 0
      %s33 = sshll.u32 %s1, 4
      %s34 = int_to_ptr.hbm [resolvable:$true] %s33
      %s35 = sshll.u32 [#allocation12], 4
      %s36 = int_to_ptr.vmem [resolvable:$true] %s35
      %38 = dma.hbm_to_vmem [thread:$0]  %s34, 128, %s36, [#allocation13]
    $region9: #{tpu_custom_call.1} parent=1 // pred_fallthru
      _
    // Predicated region
    $region10: #{tpu_custom_call.1} parent=1 // pred_check
      _
    $region11: #{tpu_custom_call.1} parent=1 // pred_check_branch
      %40 = sbr.rel (0) target = $region13
    $region12: #{tpu_custom_call.1} parent=1 // pred_region
      %42 = vsyncadd [#allocation17], 0
      %s44 = sshll.u32 %s2, 4
      %s45 = int_to_ptr.hbm [resolvable:$true] %s44
      %s46 = sshll.u32 [#allocation16], 4
      %s47 = int_to_ptr.vmem [resolvable:$true] %s46
      %49 = dma.hbm_to_vmem [thread:$0]  %s45, 128, %s47, [#allocation17]
    $region13: #{tpu_custom_call.1} parent=1 // pred_fallthru
      _
    // Predicated region
    $region14: #{tpu_custom_call.1} parent=1 // pred_check
      _
    $region15: #{tpu_custom_call.1} parent=1 // pred_check_branch
      %51 = sbr.rel (0) target = $region17
    $region16: #{tpu_custom_call.1} parent=1 // pred_region
      %53 = vsyncadd [#allocation17], 0
      %s55 = sshll.u32 %s3, 4
      %s56 = int_to_ptr.hbm [resolvable:$true] %s55
      %s57 = sshll.u32 [#allocation18], 4
      %s58 = int_to_ptr.vmem [resolvable:$true] %s57
      %60 = dma.hbm_to_vmem [thread:$0]  %s56, 128, %s58, [#allocation17]
    $region17: #{tpu_custom_call.1} parent=1 // pred_fallthru
      _
    // Predicated region
    $region18: #{tpu_custom_call.1} parent=1 // pred_check
      _
    $region19: #{tpu_custom_call.1} parent=1 // pred_check_branch
      %62 = sbr.rel (0) target = $region21
    $region20: #{tpu_custom_call.1} parent=1 // pred_region
      %64 = vsyncadd [#allocation20], 0
      %s66 = sshll.u32 %s4, 4
      %s67 = int_to_ptr.hbm [resolvable:$true] %s66
      %s68 = sshll.u32 [#allocation19], 4
      %s69 = int_to_ptr.vmem [resolvable:$true] %s68
      %71 = dma.hbm_to_vmem [thread:$0]  %s67, 128, %s69, [#allocation20]
    $region21: #{tpu_custom_call.1} parent=1 // pred_fallthru
      _
    // Predicated region
    $region22: #{tpu_custom_call.1} parent=1 // pred_check
      _
    $region23: #{tpu_custom_call.1} parent=1 // pred_check_branch
      %73 = sbr.rel (0) target = $region25
    $region24: #{tpu_custom_call.1} parent=1 // pred_region
      %75 = vsyncadd [#allocation20], 0
      %s77 = sshll.u32 %s5, 4
      %s78 = int_to_ptr.hbm [resolvable:$true] %s77
      %s79 = sshll.u32 [#allocation21], 4
      %s80 = int_to_ptr.vmem [resolvable:$true] %s79
      %82 = dma.hbm_to_vmem [thread:$0]  %s78, 128, %s80, [#allocation20]
    $region25: #{tpu_custom_call.1} parent=1 // pred_fallthru
      _
    // Predicated region
    $region26: #{tpu_custom_call.1} parent=1 // pred_check
      _
    $region27: #{tpu_custom_call.1} parent=1 // pred_check_branch
      %84 = sbr.rel (0) target = $region29
    $region28: #{tpu_custom_call.1} parent=1 // pred_region
      %86 = vsyncadd [#allocation23], 0
      %s88 = sshll.u32 %s6, 4
      %s89 = int_to_ptr.hbm [resolvable:$true] %s88
      %s90 = sshll.u32 [#allocation22], 4
      %s91 = int_to_ptr.vmem [resolvable:$true] %s90
      %93 = dma.hbm_to_vmem [thread:$0]  %s89, 128, %s91, [#allocation23]
    $region29: #{tpu_custom_call.1} parent=1 // pred_fallthru
      _
    // Predicated region
    $region30: #{tpu_custom_call.1} parent=1 // pred_check
      _
    $region31: #{tpu_custom_call.1} parent=1 // pred_check_branch
      %95 = sbr.rel (0) target = $region33
    $region32: #{tpu_custom_call.1} parent=1 // pred_region
      %97 = vsyncadd [#allocation23], 0
      %s99 = sshll.u32 %s7, 4
      %s100 = int_to_ptr.hbm [resolvable:$true] %s99
      %s101 = sshll.u32 [#allocation24], 4
      %s102 = int_to_ptr.vmem [resolvable:$true] %s101
      %104 = dma.hbm_to_vmem [thread:$0]  %s100, 128, %s102, [#allocation23]
    $region33: #{tpu_custom_call.1} parent=1 // pred_fallthru
      _
    // Predicated region
    $region34: #{tpu_custom_call.1} parent=1 // pred_check
      _
    $region35: #{tpu_custom_call.1} parent=1 // pred_check_branch
      %106 = sbr.rel (0) target = $region37
    $region36: #{tpu_custom_call.1} parent=1 // pred_region
      _
    $region37: #{tpu_custom_call.1} parent=1 // pred_fallthru
      _
    // Predicated region
    $region38: #{tpu_custom_call.1} parent=1 // pred_check
      _
    $region39: #{tpu_custom_call.1} parent=1 // pred_check_branch
      %108 = sbr.rel (0) target = $region41
    $region40: #{tpu_custom_call.1} parent=1 // pred_region
      _
    $region41: #{tpu_custom_call.1} parent=1 // pred_fallthru
      _
    // Predicated region
    $region42: #{tpu_custom_call.1} parent=1 // pred_check
      _
    $region43: #{tpu_custom_call.1} parent=1 // pred_check_branch
      %110 = sbr.rel (0) target = $region45
    $region44: #{tpu_custom_call.1} parent=1 // pred_region
      %112 = dma.done [#allocation13], 128
    $region45: #{tpu_custom_call.1} parent=1 // pred_fallthru
      _
    // Predicated region
    $region46: #{tpu_custom_call.1} parent=1 // pred_check
      _
    $region47: #{tpu_custom_call.1} parent=1 // pred_check_branch
      %114 = sbr.rel (0) target = $region49
    $region48: #{tpu_custom_call.1} parent=1 // pred_region
      %116 = dma.done [#allocation17], 128
    $region49: #{tpu_custom_call.1} parent=1 // pred_fallthru
      _
    // Predicated region
    $region50: #{tpu_custom_call.1} parent=1 // pred_check
      _
    $region51: #{tpu_custom_call.1} parent=1 // pred_check_branch
      %118 = sbr.rel (0) target = $region53
    $region52: #{tpu_custom_call.1} parent=1 // pred_region
      %120 = dma.done [#allocation17], 128
    $region53: #{tpu_custom_call.1} parent=1 // pred_fallthru
      _
    // Predicated region
    $region54: #{tpu_custom_call.1} parent=1 // pred_check
      _
    $region55: #{tpu_custom_call.1} parent=1 // pred_check_branch
      %122 = sbr.rel (0) target = $region57
    $region56: #{tpu_custom_call.1} parent=1 // pred_region
      %124 = dma.done [#allocation20], 128
    $region57: #{tpu_custom_call.1} parent=1 // pred_fallthru
      _
    // Predicated region
    $region58: #{tpu_custom_call.1} parent=1 // pred_check
      _
    $region59: #{tpu_custom_call.1} parent=1 // pred_check_branch
      %126 = sbr.rel (0) target = $region61
    $region60: #{tpu_custom_call.1} parent=1 // pred_region
      %128 = dma.done [#allocation20], 128
    $region61: #{tpu_custom_call.1} parent=1 // pred_fallthru
      _
    // Predicated region
    $region62: #{tpu_custom_call.1} parent=1 // pred_check
      _
    $region63: #{tpu_custom_call.1} parent=1 // pred_check_branch
      %130 = sbr.rel (0) target = $region65
    $region64: #{tpu_custom_call.1} parent=1 // pred_region
      %132 = dma.done [#allocation23], 128
    $region65: #{tpu_custom_call.1} parent=1 // pred_fallthru
      _
    // Predicated region
    $region66: #{tpu_custom_call.1} parent=1 // pred_check
      _
    $region67: #{tpu_custom_call.1} parent=1 // pred_check_branch
      %134 = sbr.rel (0) target = $region69
    $region68: #{tpu_custom_call.1} parent=1 // pred_region
      %136 = dma.done [#allocation23], 128
    $region69: #{tpu_custom_call.1} parent=1 // pred_fallthru
      _
    %s137 = sld [smem:[#allocation11]]
    %p138 = scmp.eq.s32.totalorder 0, 0
    // Predicated region
    $region70: #{tpu_custom_call.1} parent=1 // pred_check
      %p139 = pneg %p138
    $region71: #{tpu_custom_call.1} parent=1 // pred_check_branch
      %141 = sbr.rel (%p139) target = $region73
    $region72: #{tpu_custom_call.1} parent=1 // pred_region
      %vm142 = vcmask 0
      %143 = vst.msk [vmem:[#allocation2] sm:$0x1] %vm142, 0.0
      %144 = vst.msk [vmem:[#allocation3] sm:$0x1] %vm142, 0.0
      %145 = vst.msk [vmem:[#allocation4] sm:$0x1] %vm142, 0.0
      %146 = vst.msk [vmem:[#allocation5] sm:$0x1] %vm142, 0.0
      %147 = vst.msk [vmem:[#allocation6] sm:$0x1] %vm142, 0.0
      %148 = vst.msk [vmem:[#allocation7] sm:$0x1] %vm142, 0.0
      %vm149 = vcmask 253952
      %150 = vst.msk [vmem:[#allocation8] sm:$0x1] %vm149, 0.0
      %151 = vst.msk [vmem:[#allocation9] sm:$0x1] %vm149, 0.0
      %152 = vst.msk [vmem:[#allocation10] sm:$0x1] %vm142, 0.0
    $region73: #{tpu_custom_call.1} parent=1 // pred_fallthru
      _
    %v153 = vld [vmem:[#allocation12] sm:$0xff]
    %v154 = vld [vmem:[#allocation16] sm:$0xff]
    %v155 = vld [vmem:[#allocation18] sm:$0xff]
    %v156 = vld [vmem:[#allocation19] sm:$0xff]
    %v157 = vld [vmem:[%s9] sm:$0x1]
    %v158 = vsub.f32 %v153, %v155
    %v159 = vsub.f32 %v154, %v156
    %v160 = vld [vmem:[#allocation2] sm:$0x1]
    %v161 = vmul.f32 %v158, %v158
    %vm162 = vcmask 261120
    %v163 = vsel %vm162, %v161, 0.0
    %164 = vadd.xlane.f32.xlu0 %v163
    %v165 = vpop.xlane.xlu0 %164
    %v166 = vrot.slane %v165, 4
    %v167 = vadd.f32 %v165, %v166
    %v168 = vrot.slane %v167, 2
    %v169 = vadd.f32 %v167, %v168
    %v170 = vrot.slane %v169, 1
    %v171 = vadd.f32 %v169, %v170
    %s172 = vtos %v171
    %v173 = vmul.f32 %v159, %v159
    %v174 = vsel %vm162, %v173, 0.0
    %175 = vadd.xlane.f32.xlu0 %v174
    %v176 = vpop.xlane.xlu0 %175
    %v177 = vrot.slane %v176, 4
    %v178 = vadd.f32 %v176, %v177
    %v179 = vrot.slane %v178, 2
    %v180 = vadd.f32 %v178, %v179
    %v181 = vrot.slane %v180, 1
    %v182 = vadd.f32 %v180, %v181
    %s183 = vtos %v182
    %s184 = sadd.f32 %s172, %s183
    %v185 = vstv %s184
    %v186 = vadd.f32 %v160, %v185
    %vm187 = vcmask 0
    %188 = vst.msk [vmem:[#allocation2] sm:$0x1] %vm187, %v186
    %v189 = vld [vmem:[#allocation21] sm:$0xff]
    %v190 = vsub.f32 %v153, %v189
    %v191 = vld [vmem:[#allocation22] sm:$0xff]
    %v192 = vsub.f32 %v154, %v191
    %v193 = vld [vmem:[#allocation3] sm:$0x1]
    %v194 = vmul.f32 %v190, %v190
    %v195 = vsel %vm162, %v194, 0.0
    %196 = vadd.xlane.f32.xlu0 %v195
    %v197 = vpop.xlane.xlu0 %196
    %v198 = vrot.slane %v197, 4
    %v199 = vadd.f32 %v197, %v198
    %v200 = vrot.slane %v199, 2
    %v201 = vadd.f32 %v199, %v200
    %v202 = vrot.slane %v201, 1
    %v203 = vadd.f32 %v201, %v202
    %s204 = vtos %v203
    %v205 = vmul.f32 %v192, %v192
    %v206 = vsel %vm162, %v205, 0.0
    %207 = vadd.xlane.f32.xlu0 %v206
    %v208 = vpop.xlane.xlu0 %207
    %v209 = vrot.slane %v208, 4
    %v210 = vadd.f32 %v208, %v209
    %v211 = vrot.slane %v210, 2
    %v212 = vadd.f32 %v210, %v211
    %v213 = vrot.slane %v212, 1
    %v214 = vadd.f32 %v212, %v213
    %s215 = vtos %v214
    %s216 = sadd.f32 %s204, %s215
    %v217 = vstv %s216
    %v218 = vadd.f32 %v193, %v217
    %219 = vst.msk [vmem:[#allocation3] sm:$0x1] %vm187, %v218
    %v221 = vperm.slane %v157, 0
    %v223 = vadd.f32 %v158, %v221
    %v224 = vadd.f32 %v159, %v221
    %v225 = vld [vmem:[#allocation24] sm:$0xff]
    %v226 = vsub.f32 %v225, %v223
    %v227 = vld [vmem:[%s8] sm:$0xff]
    %v228 = vsub.f32 %v227, %v224
    %v229 = vld [vmem:[#allocation4] sm:$0x1]
    %v230 = vmul.f32 %v226, %v226
    %v231 = vsel %vm162, %v230, 0.0
    %232 = vadd.xlane.f32.xlu0 %v231
    %v233 = vpop.xlane.xlu0 %232
    %v234 = vrot.slane %v233, 4
    %v235 = vadd.f32 %v233, %v234
    %v236 = vrot.slane %v235, 2
    %v237 = vadd.f32 %v235, %v236
    %v238 = vrot.slane %v237, 1
    %v239 = vadd.f32 %v237, %v238
    %s240 = vtos %v239
    %v241 = vstv %s240
    %v242 = vadd.f32 %v229, %v241
    %243 = vst.msk [vmem:[#allocation4] sm:$0x1] %vm187, %v242
    %v244 = vld [vmem:[#allocation5] sm:$0x1]
    %v245 = vmul.f32 %v228, %v228
    %v246 = vsel %vm162, %v245, 0.0
    %247 = vadd.xlane.f32.xlu0 %v246
    %v248 = vpop.xlane.xlu0 %247
    %v249 = vrot.slane %v248, 4
    %v250 = vadd.f32 %v248, %v249
    %v251 = vrot.slane %v250, 2
    %v252 = vadd.f32 %v250, %v251
    %v253 = vrot.slane %v252, 1
    %v254 = vadd.f32 %v252, %v253
    %s255 = vtos %v254
    %v256 = vstv %s255
    %v257 = vadd.f32 %v244, %v256
    %258 = vst.msk [vmem:[#allocation5] sm:$0x1] %vm187, %v257
    %v259 = vld [vmem:[#allocation6] sm:$0x1]
    %v260 = vmul.f32 %v223, %v223
    %v261 = vsel %vm162, %v260, 0.0
    %262 = vadd.xlane.f32.xlu0 %v261
    %v263 = vpop.xlane.xlu0 %262
    %v264 = vrot.slane %v263, 4
    %v265 = vadd.f32 %v263, %v264
    %v266 = vrot.slane %v265, 2
    %v267 = vadd.f32 %v265, %v266
    %v268 = vrot.slane %v267, 1
    %v269 = vadd.f32 %v267, %v268
    %s270 = vtos %v269
    %v271 = vstv %s270
    %v272 = vadd.f32 %v259, %v271
    %273 = vst.msk [vmem:[#allocation6] sm:$0x1] %vm187, %v272
    %v274 = vld [vmem:[#allocation7] sm:$0x1]
    %v275 = vmul.f32 %v224, %v224
    %v276 = vsel %vm162, %v275, 0.0
    %277 = vadd.xlane.f32.xlu0 %v276
    %v278 = vpop.xlane.xlu0 %277
    %v279 = vrot.slane %v278, 4
    %v280 = vadd.f32 %v278, %v279
    %v281 = vrot.slane %v280, 2
    %v282 = vadd.f32 %v280, %v281
    %v283 = vrot.slane %v282, 1
    %v284 = vadd.f32 %v282, %v283
    %s285 = vtos %v284
    %v286 = vstv %s285
    %v287 = vadd.f32 %v274, %v286
    %288 = vst.msk [vmem:[#allocation7] sm:$0x1] %vm187, %v287
    %v289 = vld [vmem:[#allocation8] sm:$0x1]
    %v290 = vsel %vm162, %v223, 0.0
    %v291 = vrot.slane %v290, 4
    %v292 = vadd.f32 %v290, %v291
    %v293 = vrot.slane %v292, 2
    %v294 = vadd.f32 %v292, %v293
    %v295 = vrot.slane %v294, 1
    %v296 = vadd.f32 %v294, %v295
    %v297 = vadd.f32 %v289, %v296
    %vm298 = vcmask 253952
    %299 = vst.msk [vmem:[#allocation8] sm:$0x1] %vm298, %v297
    %v300 = vld [vmem:[#allocation9] sm:$0x1]
    %v301 = vsel %vm162, %v224, 0.0
    %v302 = vrot.slane %v301, 4
    %v303 = vadd.f32 %v301, %v302
    %v304 = vrot.slane %v303, 2
    %v305 = vadd.f32 %v303, %v304
    %v306 = vrot.slane %v305, 1
    %v307 = vadd.f32 %v305, %v306
    %v308 = vadd.f32 %v300, %v307
    %309 = vst.msk [vmem:[#allocation9] sm:$0x1] %vm298, %v308
    %v310 = vmul.f32 %v155, %v155
    %v311 = vsel %vm162, %v310, 0.0
    %312 = vadd.xlane.f32.xlu0 %v311
    %v313 = vpop.xlane.xlu0 %312
    %v314 = vrsqrt.pop %v313
    %v315 = vmul.f32 %v314, %v313
    %v316 = vmul.f32 %v315, %v314
    %v317 = vmul.f32 0.5, %v316
    %v318 = vsub.f32 1.5, %v317
    %v319 = vmul.f32 %v314, %v318
    %v320 = vmul.f32 %v313, %v319
    %vm321 = vcmp.eq.f32.partialorder %v313, inf
    %v322 = vsel %vm321, %v313, %v320
    %vm323 = vcmp.eq.f32.partialorder %v313, 0.0
    %v324 = vand.u32 %v313, 2147483648
    %v325 = vsel %vm323, %v324, %v322
    %v326 = vmax.f32 %v325, 1e-12
    %v327 = vrcp.pop %v326
    %v328 = vmul.f32 %v326, %v327
    %v329 = vsub.f32 1.0, %v328
    %v330 = vmul.f32 %v327, %v329
    %v331 = vadd.f32 %v327, %v330
    %vm332 = vweird.f32 %v326
    %vm333 = vweird.f32 %v327
    %vm334 = vmor %vm332, %vm333
    %v335 = vsel %vm334, %v327, %v331
    %v336 = vand.u32 2147483647, %v326
    %vm337 = vcmp.eq.f32.partialorder %v336, 8.507059e+37
    %v338 = vand.u32 %v326, 2147483648
    %v339 = vor.u32 1.1754944e-38, %v338
    %v340 = vsel %vm337, %v339, %v335
    %v341 = vmul.f32 %v155, %v340
    %v342 = vmul.f32 %v156, %v156
    %v343 = vsel %vm162, %v342, 0.0
    %344 = vadd.xlane.f32.xlu0 %v343
    %v345 = vpop.xlane.xlu0 %344
    %v346 = vrsqrt.pop %v345
    %v347 = vmul.f32 %v346, %v345
    %v348 = vmul.f32 %v347, %v346
    %v349 = vmul.f32 0.5, %v348
    %v350 = vsub.f32 1.5, %v349
    %v351 = vmul.f32 %v346, %v350
    %v352 = vmul.f32 %v345, %v351
    %vm353 = vcmp.eq.f32.partialorder %v345, inf
    %v354 = vsel %vm353, %v345, %v352
    %vm355 = vcmp.eq.f32.partialorder %v345, 0.0
    %v356 = vand.u32 %v345, 2147483648
    %v357 = vsel %vm355, %v356, %v354
    %v358 = vmax.f32 %v357, 1e-12
    %v359 = vrcp.pop %v358
    %v360 = vmul.f32 %v358, %v359
    %v361 = vsub.f32 1.0, %v360
    %v362 = vmul.f32 %v359, %v361
    %v363 = vadd.f32 %v359, %v362
    %vm364 = vweird.f32 %v358
    %vm365 = vweird.f32 %v359
    %vm366 = vmor %vm364, %vm365
    %v367 = vsel %vm366, %v359, %v363
    %v368 = vand.u32 2147483647, %v358
    %vm369 = vcmp.eq.f32.partialorder %v368, 8.507059e+37
    %v370 = vand.u32 %v358, 2147483648
    %v371 = vor.u32 1.1754944e-38, %v370
    %v372 = vsel %vm369, %v371, %v367
    %v373 = vmul.f32 %v156, %v372
    %v374 = vld [vmem:[#allocation10] sm:$0x1]
    %v375 = vmul.f32 %v341, %v373
    %v376 = vsel %vm162, %v375, 0.0
    %377 = vadd.xlane.f32.xlu0 %v376
    %v378 = vpop.xlane.xlu0 %377
    %v379 = vrot.slane %v378, 4
    %v380 = vadd.f32 %v378, %v379
    %v381 = vrot.slane %v380, 2
    %v382 = vadd.f32 %v380, %v381
    %v383 = vrot.slane %v382, 1
    %v384 = vadd.f32 %v382, %v383
    %s385 = vtos %v384
    %s386 = smul.f32 %s137, %s385
    %v387 = vstv %s386
    %v388 = vadd.f32 %v374, %v387
    %389 = vst.msk [vmem:[#allocation10] sm:$0x1] %vm187, %v388
    %v390 = vstv %s137
    %v391 = vmul.f32 %v390, %v341
    %v392 = vpack.c.bf16 %v391, %v391
    %vm393 = vcmask 257024
    %394 = vst.msk [vmem:[#allocation26] sm:$0xf] %vm393, %v392
    %v395 = vpack.c.bf16 %v373, %v373
    %396 = vst.msk [vmem:[#allocation27] sm:$0xf] %vm393, %v395
    // Predicated region
    $region74: #{tpu_custom_call.1} parent=1 // pred_check
      %p397 = pneg %p138
    $region75: #{tpu_custom_call.1} parent=1 // pred_check_branch
      %399 = sbr.rel (%p397) target = $region77
    $region76: #{tpu_custom_call.1} parent=1 // pred_region
      %v400 = vld [vmem:[#allocation8] sm:$0x1]
      %v401 = vmul.f32 %v400, 0.125
      %v402 = vld [vmem:[#allocation9] sm:$0x1]
      %v403 = vmul.f32 %v402, 0.125
      %v404 = vld [vmem:[#allocation6] sm:$0x1]
      %v405 = vadd.f32 %v404, 0.0
      %s406 = vtos %v405
      %s407 = smul.f32 %s406, 0.00390625
      %v408 = vmul.f32 %v401, %v401
      %v409 = vsel %vm298, %v408, 0.0
      %410 = vadd.xlane.f32.xlu0 %v409
      %v411 = vpop.xlane.xlu0 %410
      %v412 = vrot.slane %v411, 4
      %v413 = vadd.f32 %v411, %v412
      %v414 = vrot.slane %v413, 2
      %v415 = vadd.f32 %v413, %v414
      %v416 = vrot.slane %v415, 1
      %v417 = vadd.f32 %v415, %v416
      %s418 = vtos %v417
      %v419 = vrcp.pop 32.0
      %v420 = vmul.f32 32.0, %v419
      %v421 = vsub.f32 1.0, %v420
      %v422 = vmul.f32 %v419, %v421
      %v423 = vadd.f32 %v419, %v422
      %vm424 = vweird.f32 %v419
      %v425 = vsel %vm424, %v419, %v423
      %s426 = vtos %v425
      %s427 = smul.f32 %s418, %s426
      %s428 = ssub.f32 %s407, %s427
      %v429 = vld [vmem:[#allocation7] sm:$0x1]
      %v430 = vadd.f32 %v429, 0.0
      %s431 = vtos %v430
      %s432 = smul.f32 %s431, 0.00390625
      %v433 = vmul.f32 %v403, %v403
      %v434 = vsel %vm298, %v433, 0.0
      %435 = vadd.xlane.f32.xlu0 %v434
      %v436 = vpop.xlane.xlu0 %435
      %v437 = vrot.slane %v436, 4
      %v438 = vadd.f32 %v436, %v437
      %v439 = vrot.slane %v438, 2
      %v440 = vadd.f32 %v438, %v439
      %v441 = vrot.slane %v440, 1
      %v442 = vadd.f32 %v440, %v441
      %s443 = vtos %v442
      %v444 = vrcp.pop 32.0
      %v445 = vmul.f32 32.0, %v444
      %v446 = vsub.f32 1.0, %v445
      %v447 = vmul.f32 %v444, %v446
      %v448 = vadd.f32 %v444, %v447
      %vm449 = vweird.f32 %v444
      %v450 = vsel %vm449, %v444, %v448
      %s451 = vtos %v450
      %s452 = smul.f32 %s443, %s451
      %s453 = ssub.f32 %s432, %s452
      %v454 = vld [vmem:[#allocation2] sm:$0x1]
      %v455 = vadd.f32 %v454, 0.0
      %s456 = vtos %v455
      %s457 = smul.f32 %s456, 0.00390625
      %s458 = scalar_lea.smem [#allocation25], 0
      %459 = sst [smem:[%s458]] %s457
      %v460 = vld [vmem:[#allocation3] sm:$0x1]
      %v461 = vadd.f32 %v460, 0.0
      %s462 = vtos %v461
      %s463 = smul.f32 %s462, 0.00390625
      %s464 = scalar_lea.smem [#allocation25], 1
      %465 = sst [smem:[%s464]] %s463
      %v466 = vld [vmem:[#allocation4] sm:$0x1]
      %v467 = vadd.f32 %v466, 0.0
      %s468 = vtos %v467
      %s469 = smul.f32 %s468, 0.00390625
      %s470 = scalar_lea.smem [#allocation25], 2
      %471 = sst [smem:[%s470]] %s469
      %v472 = vld [vmem:[#allocation5] sm:$0x1]
      %v473 = vadd.f32 %v472, 0.0
      %s474 = vtos %v473
      %s475 = smul.f32 %s474, 0.00390625
      %s476 = scalar_lea.smem [#allocation25], 3
      %477 = sst [smem:[%s476]] %s475
      %s478 = smax.f32 %s428, 0.0
      %s479 = scalar_lea.smem [#allocation25], 4
      %480 = sst [smem:[%s479]] %s478
      %s481 = smax.f32 %s453, 0.0
      %s482 = scalar_lea.smem [#allocation25], 5
      %483 = sst [smem:[%s482]] %s481
      %v484 = vld [vmem:[#allocation10] sm:$0x1]
      %v485 = vadd.f32 %v484, 0.0
      %s486 = vtos %v485
      %s487 = scalar_lea.smem [#allocation25], 6
      %488 = sst [smem:[%s487]] %s486
      %s489 = scalar_lea.smem [#allocation25], 7
      %490 = sst [smem:[%s489]] 0.0
    $region77: #{tpu_custom_call.1} parent=1 // pred_fallthru
      _
    // Predicated region
    $region78: #{tpu_custom_call.1} parent=1 // pred_check
      _
    $region79: #{tpu_custom_call.1} parent=1 // pred_check_branch
      %492 = sbr.rel (0) target = $region81
    $region80: #{tpu_custom_call.1} parent=1 // pred_region
      %494 = vsyncadd [#allocation15], 0
      %s496 = sshll.u32 %s10, 4
      %s497 = int_to_ptr.hbm [resolvable:$true] %s496
      %499 = dma.smem_to_hbm [#allocation25], 16, %s497, [#allocation15]
    $region81: #{tpu_custom_call.1} parent=1 // pred_fallthru
      _
    // Predicated region
    $region82: #{tpu_custom_call.1} parent=1 // pred_check
      _
    $region83: #{tpu_custom_call.1} parent=1 // pred_check_branch
      %501 = sbr.rel (0) target = $region85
    $region84: #{tpu_custom_call.1} parent=1 // pred_region
      %503 = vsyncadd [#allocation14], 0
      %s505 = sshll.u32 [#allocation26], 4
      %s506 = int_to_ptr.vmem [resolvable:$true] %s505
      %s507 = sshll.u32 %s11, 4
      %s508 = int_to_ptr.hbm [resolvable:$true] %s507
      %510 = dma.vmem_to_hbm [thread:$0]  %s506, 64, %s508, [#allocation14]
    $region85: #{tpu_custom_call.1} parent=1 // pred_fallthru
      _
    // Predicated region
    $region86: #{tpu_custom_call.1} parent=1 // pred_check
      _
    $region87: #{tpu_custom_call.1} parent=1 // pred_check_branch
      %512 = sbr.rel (0) target = $region89
    $region88: #{tpu_custom_call.1} parent=1 // pred_region
      %514 = vsyncadd [#allocation28], 0
      %s516 = sshll.u32 [#allocation27], 4
      %s517 = int_to_ptr.vmem [resolvable:$true] %s516
      %s518 = sshll.u32 %s12, 4
      %s519 = int_to_ptr.hbm [resolvable:$true] %s518
      %521 = dma.vmem_to_hbm [thread:$0]  %s517, 64, %s519, [#allocation28]
    $region89: #{tpu_custom_call.1} parent=1 // pred_fallthru
      _
    // Predicated region
    $region90: #{tpu_custom_call.1} parent=1 // pred_check
      _
    $region91: #{tpu_custom_call.1} parent=1 // pred_check_branch
      %523 = sbr.rel (0) target = $region93
    $region92: #{tpu_custom_call.1} parent=1 // pred_region
      %525 = dma.done [#allocation15], 16
    $region93: #{tpu_custom_call.1} parent=1 // pred_fallthru
      _
    // Predicated region
    $region94: #{tpu_custom_call.1} parent=1 // pred_check
      _
    $region95: #{tpu_custom_call.1} parent=1 // pred_check_branch
      %527 = sbr.rel (0) target = $region97
    $region96: #{tpu_custom_call.1} parent=1 // pred_region
      %529 = dma.done [#allocation14], 64
    $region97: #{tpu_custom_call.1} parent=1 // pred_fallthru
      _
    // Predicated region
    $region98: #{tpu_custom_call.1} parent=1 // pred_check
      _
    $region99: #{tpu_custom_call.1} parent=1 // pred_check_branch
      %531 = sbr.rel (0) target = $region101
    $region100: #{tpu_custom_call.1} parent=1 // pred_region
      %533 = dma.done [#allocation28], 64
    $region101: #{tpu_custom_call.1} parent=1 // pred_fallthru
      _
    %534 = sfence
    %535 = vsyncpa [#allocation13], 1
    %536 = vsyncpa [#allocation17], 1
    %537 = vsyncpa [#allocation20], 1
    %538 = vsyncpa [#allocation23], 1
    %539 = vsyncpa [#allocation14], 1
    %540 = vsyncpa [#allocation28], 1
    %541 = vsyncpa [#allocation15], 1

</llo_original>
